<compile_context>
chip_gen: v6e
topology: v6e:2x2x1
jax: 0.10.0
libtpu: 0.0.40
codegen_flags: <defaults>
</compile_context>

<pallas_src>
import math

import jax
import jax.numpy as jnp
from jax.experimental import pallas as pl
from jax.experimental.pallas import tpu as pltpu


def _round_up(x, m):
    return ((x + m - 1) // m) * m


def _cdiv(a, b):
    return -(-a // b)


def _skc_kernel(w_ref, x_ref, o_ref):
    # w_ref: (C_out, C_in) banded weight (VMEM-resident),
    # x_ref: (C_in, TILE_HW), o_ref: (C_out, TILE_HW).
    o_ref[...] = jnp.dot(
        w_ref[...], x_ref[...], preferred_element_type=jnp.float32
    ).astype(o_ref.dtype)


def _vmem_capacity_bytes(default=64 * 1024 * 1024):
    try:
        info = pltpu.get_tpu_info()
        cap = getattr(info, "vmem_capacity_bytes", None)
        if cap:
            return int(cap)
    except Exception:
        pass
    return default


def _choose_tile_hw(hw, batch, c_in, c_out, itemsize, tile_cap, budget_bytes):
    """Pick a lane-dense (multiple-of-128) spatial tile, balanced over the grid."""
    if hw <= 128:
        return hw, 1                                   # full-extent block, always legal
    cap = max(128, (min(tile_cap, _round_up(hw, 128)) // 128) * 128)
    per_lane = 2 * (c_in + c_out) * itemsize           # double-buffered x + out tiles
    w_bytes = 2 * c_out * c_in * itemsize              # resident weight (2 buffers)
    while cap > 128 and per_lane * cap + w_bytes > budget_bytes:
        cap -= 128
    n_tiles = _cdiv(hw, cap)
    if batch * n_tiles < 2:                            # keep both v7x TCs busy
        n_tiles = 2
    tile_hw = _round_up(_cdiv(hw, n_tiles), 128)       # balanced, <= cap, 128-multiple
    return tile_hw, _cdiv(hw, tile_hw)


def skc_forward(x_nchw, weights, *, output_channel, input_unit_dim,
                output_unit_dim, stride, tile_hw_max=2048):
    """x_nchw: (B, C_in, H, W). weights: (output_unit_dim, input_unit_dim).
    Returns (B, C_out, H, W) with the same dtype as x."""
    B, C_in, H, W = x_nchw.shape
    C_out = output_channel
    K = input_unit_dim
    widow_n = C_out // output_unit_dim
    assert C_out == output_unit_dim * widow_n
    # Sliding channel window must stay in-bounds (same assumption as the CUDA op).
    assert (C_out - 1) * stride + K <= C_in, "channel window out of bounds"

    dtype = x_nchw.dtype
    hw = H * W
    x = x_nchw.reshape(B, C_in, hw)                    # free (merges trailing dims)

    # Dense banded weight: W_band[o, o*stride + k] = weights[o // widow_n, k].
    w_eff = jnp.repeat(weights.astype(dtype), widow_n, axis=0)        # (C_out, K)
    rows = jnp.arange(C_out)
    cols = rows[:, None] * stride + jnp.arange(K)[None, :]            # (C_out, K)
    w_band = jnp.zeros((C_out, C_in), dtype).at[rows[:, None], cols].set(w_eff)

    # Generation-aware tiling budget (v5e/v6e: 128 MiB VMEM, v7x: 64 MiB/TC).
    itemsize = jnp.dtype(dtype).itemsize
    vmem_cap = _vmem_capacity_bytes()
    vmem_limit = int(min(vmem_cap, 128 * 1024 * 1024) * 3 // 4)       # headroom
    tile_budget = vmem_limit // 2
    tile_cap = max(128, (tile_hw_max // 128) * 128)
    tile_hw, n_tiles = _choose_tile_hw(hw, B, C_in, C_out, itemsize,
                                       tile_cap, tile_budget)
    # Never request less VMEM than the minimum double-buffered tiles need.
    min_need = (2 * (C_in + C_out) * tile_hw + 2 * C_out * C_in) * itemsize
    vmem_limit = max(vmem_limit, min_need + (4 << 20))

    out = pl.pallas_call(
        _skc_kernel,
        out_shape=jax.ShapeDtypeStruct((B, C_out, hw), dtype),
        grid_spec=pltpu.PrefetchScalarGridSpec(
            num_scalar_prefetch=0,
            grid=(B, n_tiles),
            in_specs=[
                # banded weight: constant index_map -> stays VMEM-resident.
                pl.BlockSpec((C_out, C_in), lambda b, t: (0, 0)),
                # x: per-batch, full channel extent, lane-tiled spatial axis.
                pl.BlockSpec((None, C_in, tile_hw), lambda b, t: (b, 0, t)),
            ],
            out_specs=pl.BlockSpec((None, C_out, tile_hw),
                                   lambda b, t: (b, 0, t)),
        ),
        compiler_params=pltpu.CompilerParams(
            dimension_semantics=("parallel", "parallel"),
            vmem_limit_bytes=vmem_limit,
        ),
    )(w_band, x)

    return out.reshape(B, C_out, H, W)                 # free (splits last dim)


if __name__ == "__main__":
    # Small, self-consistent shapes (widow_n = 2, strided channel window).
    input_unit_dim = 4
    output_unit_dim = 4
    output_channel = 8
    stride = 2
    input_channel = (output_channel - 1) * stride + input_unit_dim  # = 18
    B, H, W = 2, 16, 16

    key = jax.random.PRNGKey(0)
    k_x, k_w = jax.random.split(key)

    x = jax.random.normal(k_x, (B, input_channel, H, W), dtype=jnp.float32)

    # reset_parameters(): uniform(-stdv, stdv), stdv = 1/sqrt(input_unit_dim)
    stdv = 1.0 / math.sqrt(input_unit_dim)
    weights = jax.random.uniform(
        k_w, (output_unit_dim, input_unit_dim),
        minval=-stdv, maxval=stdv, dtype=jnp.float32)

    out = skc_forward(
        x, weights,
        output_channel=output_channel,
        input_unit_dim=input_unit_dim,
        output_unit_dim=output_unit_dim,
        stride=stride)
    out = jax.block_until_ready(out)

    # Pure-JAX reference (same inferred semantics) for a sanity check.
    widow_n = output_channel // output_unit_dim
    w_eff = jnp.repeat(weights, widow_n, axis=0)
    gathered = jnp.stack(
        [x[:, o * stride:o * stride + input_unit_dim, :, :]
         for o in range(output_channel)], axis=1)            # (B, C_out, K, H, W)
    ref = jnp.einsum("bokhw,ok->bohw", gathered, w_eff)

    assert out.shape == (B, output_channel, H, W)
    # Tolerance is loose enough for MXU f32 (multi-pass bf16) contraction,
    # but tight enough to catch any banded-indexing / semantics bug.
    assert jnp.allclose(out, ref, atol=1e-2, rtol=1e-2), \
        float(jnp.max(jnp.abs(out - ref)))

    print("KERNEL_OK")
</pallas_src>

<mosaic_0001>
module attributes {stable_mosaic.version = 11 : i64} {
  func.func @_skc_kernel(%arg0: i32, %arg1: i32, %arg2: memref<8x18xf32, #tpu.memory_space<vmem>>, %arg3: memref<1x18x256xf32, #tpu.memory_space<vmem>>, %arg4: memref<1x8x256xf32, #tpu.memory_space<vmem>>) attributes {dimension_semantics = [#tpu.dimension_semantics<parallel>, #tpu.dimension_semantics<parallel>], iteration_bounds = array<i64: 2, 1>, scalar_prefetch = 0 : i64, scratch_operands = 0 : i64, tpu.core_type = #tpu.core_type<tc>, window_params = [{pipeline_mode = #tpu.pipeline_mode<synchronous>, transform_indices = @transform_0, window_bounds = array<i64: 8, 18>}, {transform_indices = @transform_1, window_bounds = array<i64: 1, 18, 256>}, {transform_indices = @transform_2, window_bounds = array<i64: 1, 8, 256>}]} {
    %c0 = arith.constant 0 : index
    %c0_0 = arith.constant 0 : index
    %0 = vector.load %arg2[%c0, %c0_0] : memref<8x18xf32, #tpu.memory_space<vmem>>, vector<8x18xf32>
    %c0_1 = arith.constant 0 : index
    %c0_2 = arith.constant 0 : index
    %c0_3 = arith.constant 0 : index
    %1 = vector.load %arg3[%c0_1, %c0_2, %c0_3] : memref<1x18x256xf32, #tpu.memory_space<vmem>>, vector<1x18x256xf32>
    %2 = vector.shape_cast %1 : vector<1x18x256xf32> to vector<18x256xf32>
    %cst = arith.constant dense<0.000000e+00> : vector<8x256xf32>
    %3 = tpu.matmul %0, %2, %cst {dimension_numbers = #tpu.dot_dimension_numbers<[1], [0], [0], [1], [0, 0, 1, 1], [], []>} : vector<8x18xf32>, vector<18x256xf32>, vector<8x256xf32> -> vector<8x256xf32>
    %c0_4 = arith.constant 0 : index
    %c0_5 = arith.constant 0 : index
    %c0_6 = arith.constant 0 : index
    %4 = vector.load %arg4[%c0_4, %c0_5, %c0_6] : memref<1x8x256xf32, #tpu.memory_space<vmem>>, vector<1x8x256xf32>
    %5 = vector.shape_cast %4 : vector<1x8x256xf32> to vector<8x256xf32>
    %6 = vector.shape_cast %3 : vector<8x256xf32> to vector<1x8x256xf32>
    tpu.vector_store %arg4[%c0_4, %c0_5, %c0_6], %6 {strides = array<i32>} : memref<1x8x256xf32, #tpu.memory_space<vmem>>, vector<1x8x256xf32>,
    return
  }
  func.func @transform_0(%arg0: i32, %arg1: i32) -> (i32, i32) {
    %c0_i32 = arith.constant 0 : i32
    %c0_i32_0 = arith.constant 0 : i32
    %c0_i32_1 = arith.constant 0 : i32
    return %c0_i32, %c0_i32_0 : i32, i32
  }
  func.func @transform_1(%arg0: i32, %arg1: i32) -> (i32, i32, i32) {
    %c0_i32 = arith.constant 0 : i32
    %c0_i32_0 = arith.constant 0 : i32
    return %arg0, %c0_i32, %arg1 : i32, i32, i32
  }
  func.func @transform_2(%arg0: i32, %arg1: i32) -> (i32, i32, i32) {
    %c0_i32 = arith.constant 0 : i32
    %c0_i32_0 = arith.constant 0 : i32
    return %arg0, %c0_i32, %arg1 : i32, i32, i32
  }
}

</mosaic_0001>

<llo_original>
// kernel: tpu_custom_call.1
$region0: #{tpu_custom_call.1}
  #allocation0 [shape = 'u32[]', space=smem, size = 0x4, offset = 0x4, fixed_abs, tag = 'smem constant byte address 0x4 - core index']
  #allocation1 [shape = 'u32[144,128]{1,0:T(1,128)}', space=vmem, size = 0x12000, scoped, tag = 'internal scratch']
  %s0 = inlined_call_operand.vmem [shape: f32[8,18], index: 0, kind: input, shape index: {}]
  %s1 = inlined_call_operand.vmem [shape: f32[2,18,256], index: 1, kind: input, shape index: {}]
  %s2 = inlined_call_operand.hbm [shape: f32[2,8,256], index: 2, kind: output, shape index: {}]
  %s3 = sld [smem:[#allocation0]]
  $region41: #{tpu_custom_call.1} parent=0
    _
  %s5 = ssub.s32 1, %s3
  %s6 = scalar_select 0, %s5, %s3
  $region1: #{tpu_custom_call.1} parent=0
    #allocation2 [shape = 'u8[16384]{0}', space=vmem, size = 0x4000, scoped, tag = 'output window, operand 0']
    #allocation3 [shape = 's32[2]{0}', space=sflag, size = 0x8, scoped, tag = 'scoped memory for tpu_custom_call.1']
    %7 = vsyncpa [#allocation3], 0
    %s8 = scalar_lea.sflag [#allocation3], 1
    %9 = vsyncpa %s8, 0
    loop: start=0, step=1, limit=4
    $region2: #{tpu_custom_call.1} parent=1 // loop_pre_header
      _
    $region3: #{tpu_custom_call.1} parent=1 // loop_header
      %s11 = sphi 0, %s15
      %p12 = scmp.ge.s32.totalorder %s11, 4
      %s18 = sphi 0, %s30
      %s19 = sphi 0, %s26
      %s20 = sphi 0, %s18
      %s21 = sphi 0, %s19
      %s22 = sphi 0, %s20
      %s23 = sphi 0, %s21
      %s31 = sphi 0, %s31
      %s33 = sphi 0, %s31
      %s34 = sphi 0, %s33
      %s48 = sphi 0, %s34
      %s56 = sphi 0, %s58
      %s59 = sphi 0, %s56
      %s60 = sphi 0, %s59
      %s76 = sphi 0, %s60
      %s84 = sphi 0, %s86
      %s87 = sphi 0, %s84
      %s88 = sphi 0, %s87
      %s104 = sphi 0, %s88
    $region4: #{tpu_custom_call.1} parent=1 // loop_header_branch
      %14 = sbr.rel (%p12) target = $region8
    $region5: #{tpu_custom_call.1} parent=1 // loop_body
      %s16 = ssub.s32 %s11, 1
      %s17 = ssub.s32 %s11, 2
      %s24 = sadd.s32 1, %s19
      %p25 = scmp.ge.s32.totalorder %s24, 1
      %s26 = scalar_select %p25, 0, %s24
      %s27 = sadd.s32 1, %s18
      %s28 = scalar_select %p25, %s27, %s18
      %p29 = scmp.ge.s32.totalorder %s28, 2
      %s30 = scalar_select %p29, 0, %s28
      %s32 = sadd.s32 %s31, 1
      %p35 = scmp.eq.s32.totalorder %s11, 1
      %p36 = scmp.ne.s32.totalorder %s31, %s33
      %p37 = scmp.eq.s32.totalorder %s11, 0
      %p38 = por %p36, %p37
      %p39 = scmp.ne.s32.totalorder %s31, %s33
      %p40 = scmp.eq.s32.totalorder %s16, 1
      %p41 = por %p39, %p40
      %p42 = scmp.ne.s32.totalorder %s33, %s34
      %p43 = scmp.eq.s32.totalorder %s16, 0
      %p44 = por %p42, %p43
      %p45 = scmp.ne.s32.totalorder %s33, %s34
      %p46 = scmp.eq.s32.totalorder %s17, 1
      %p47 = por %p45, %p46
      %p49 = scmp.ne.s32.totalorder %s34, %s48
      %p50 = scmp.eq.s32.totalorder %s17, 0
      %p51 = por %p49, %p50
      %s52 = ssub.s32 %s18, %s30
      %s53 = ssub.s32 %s19, %s26
      %s54 = sor.u32 %s52, %s53
      %p55 = scmp.eq.s32.totalorder %s54, 0
      %s57 = sadd.s32 %s56, 1
      %s58 = scalar_select %p55, %s56, %s57
      %p61 = pneg %p55
      %p62 = scmp.eq.s32.totalorder %s11, 1
      %p63 = por %p61, %p62
      %p64 = scmp.ne.s32.totalorder %s56, %s59
      %p65 = scmp.eq.s32.totalorder %s11, 0
      %p66 = por %p64, %p65
      %p67 = scmp.ne.s32.totalorder %s56, %s59
      %p68 = scmp.eq.s32.totalorder %s16, 1
      %p69 = por %p67, %p68
      %p70 = scmp.ne.s32.totalorder %s59, %s60
      %p71 = scmp.eq.s32.totalorder %s16, 0
      %p72 = por %p70, %p71
      %p73 = scmp.ne.s32.totalorder %s59, %s60
      %p74 = scmp.eq.s32.totalorder %s17, 1
      %p75 = por %p73, %p74
      %p77 = scmp.ne.s32.totalorder %s60, %s76
      %p78 = scmp.eq.s32.totalorder %s17, 0
      %p79 = por %p77, %p78
      %s80 = ssub.s32 %s18, %s30
      %s81 = ssub.s32 %s19, %s26
      %s82 = sor.u32 %s80, %s81
      %p83 = scmp.eq.s32.totalorder %s82, 0
      %s85 = sadd.s32 %s84, 1
      %s86 = scalar_select %p83, %s84, %s85
      %p89 = pneg %p83
      %p90 = scmp.eq.s32.totalorder %s11, 1
      %p91 = por %p89, %p90
      %p92 = scmp.ne.s32.totalorder %s84, %s87
      %p93 = scmp.eq.s32.totalorder %s11, 0
      %p94 = por %p92, %p93
      %p95 = scmp.ne.s32.totalorder %s84, %s87
      %p96 = scmp.eq.s32.totalorder %s16, 1
      %p97 = por %p95, %p96
      %p98 = scmp.ne.s32.totalorder %s87, %s88
      %p99 = scmp.eq.s32.totalorder %s16, 0
      %p100 = por %p98, %p99
      %p101 = scmp.ne.s32.totalorder %s87, %s88
      %p102 = scmp.eq.s32.totalorder %s17, 1
      %p103 = por %p101, %p102
      %p105 = scmp.ne.s32.totalorder %s88, %s104
      %p106 = scmp.eq.s32.totalorder %s17, 0
      %p107 = por %p105, %p106
      %p108 = scmp.le.s32.totalorder 1, %s11
      %p109 = scmp.lt.s32.totalorder %s11, 3
      %p110 = pnand %p108, %p109
      %p111 = pneg %p110
      // Predicated region
      $region9: #{tpu_custom_call.1} parent=5 // pred_check
        _
      $region10: #{tpu_custom_call.1} parent=5 // pred_check_branch
        %113 = sbr.rel (%p110) target = $region12
      $region11: #{tpu_custom_call.1} parent=5 // pred_region
        %s114 = ssub.s32 %s11, 1
        // Predicated region
        $region13: #{tpu_custom_call.1} parent=11 // pred_check
          %p115 = pneg %p44
        $region14: #{tpu_custom_call.1} parent=11 // pred_check_branch
          %117 = sbr.rel (%p115) target = $region16
        $region15: #{tpu_custom_call.1} parent=11 // pred_region
          _
        $region16: #{tpu_custom_call.1} parent=11 // pred_fallthru
          _
      $region12: #{tpu_custom_call.1} parent=5 // pred_fallthru
        _
      %p118 = scmp.lt.s32.totalorder %s11, 2
      // Predicated region
      $region17: #{tpu_custom_call.1} parent=5 // pred_check
        %p119 = pneg %p118
      $region18: #{tpu_custom_call.1} parent=5 // pred_check_branch
        %121 = sbr.rel (%p119) target = $region20
      $region19: #{tpu_custom_call.1} parent=5 // pred_region
        // Predicated region
        $region21: #{tpu_custom_call.1} parent=19 // pred_check
          %p122 = pneg %p66
        $region22: #{tpu_custom_call.1} parent=19 // pred_check_branch
          %124 = sbr.rel (%p122) target = $region24
        $region23: #{tpu_custom_call.1} parent=19 // pred_region
          %s125 = smul.u32 2, %s19
          %p126 = scmp.lt.s32.totalorder %s18, 1
          %s127 = scalar_select %p126, %s18, 1
          %p128 = scmp.lt.s32.totalorder %s125, 1
          %s129 = scalar_select %p128, %s125, 1
          %s130 = smul.addr %s127, 6
          %s131 = sadd.s32 %s129, %s130
          %s132 = smul.addr %s131, 8
          %s133 = scalar_lea.vmem %s1, %s132
          %s134 = smul.u32 2, %s19
        $region24: #{tpu_custom_call.1} parent=19 // pred_fallthru
          _
      $region20: #{tpu_custom_call.1} parent=5 // pred_fallthru
        _
      %p135 = scmp.le.s32.totalorder 1, %s11
      %p136 = scmp.lt.s32.totalorder %s11, 3
      %p137 = pnand %p135, %p136
      %p138 = pneg %p137
      // Predicated region
      $region25: #{tpu_custom_call.1} parent=5 // pred_check
        _
      $region26: #{tpu_custom_call.1} parent=5 // pred_check_branch
        %140 = sbr.rel (%p137) target = $region28
      $region27: #{tpu_custom_call.1} parent=5 // pred_region
        %s141 = ssub.s32 %s11, 1
        %p142 = pneg %p44
        %p143 = pneg %p41
        %s144 = smul.u32 2, %s21
        %p145 = scmp.lt.s32.totalorder %s20, 1
        %s146 = scalar_select %p145, %s20, 1
        %p147 = scmp.lt.s32.totalorder %s144, 1
        %s148 = scalar_select %p147, %s144, 1
        %s149 = smul.addr %s146, 6
        %s150 = sadd.s32 %s148, %s149
        %s151 = smul.addr %s150, 8
        %s152 = scalar_lea.vmem %s1, %s151
        %p153 = pneg %p72
        %p154 = pneg %p69
        %p155 = pneg %p100
        %p156 = pneg %p97
        %s157 = sand.u32 %s87, 1
        %s158 = scalar_lea.sflag [#allocation3], %s157
        %s159 = sand.u32 %s87, 1
        %s160 = smul.addr %s159, 16
        %s161 = scalar_lea.vmem [#allocation2], %s160
        %s162 = smul.u32 2, %s21
        %p163 = scmp.lt.s32.totalorder %s20, 1
        %s164 = scalar_select %p163, %s20, 1
        %p165 = scmp.lt.s32.totalorder %s162, 1
        %s166 = scalar_select %p165, %s162, 1
        %s167 = smul.addr %s164, 6
        %s168 = sadd.s32 %s166, %s167
        %s169 = smul.addr %s168, 8
        %s170 = scalar_lea.vmem %s1, %s169
        %s171 = smul.u32 2, %s21
        %s172 = smul.u32 2, %s21
        %v173 = vld [vmem:[%s0] sm:$0xff]
        %v174 = vld [vmem:[%s170] sm:$0xff]
        %v175 = vld [vmem:[%s170 + $0x8] sm:$0xff]
        %v176 = vld [vmem:[%s170 + $0x10] sm:$0xff]
        %v177 = vld [vmem:[%s170 + $0x18] sm:$0xff]
        %v178 = vld [vmem:[%s170 + $0x20] sm:$0x3]
        %v179 = vld [vmem:[%s170 + $0x28] sm:$0x3]
        %vm180 = vcmask 146432
        %v182 = vsel %vm180, %v173, 0
        %vm184 = vcmask 1041408
        %v186 = vsel %vm184, %v178, 0
        %v189 = vsel %vm184, %v179, 0
        %191 = vmatprep.subr.mxu0 0.0
        %192 = vmatpush1.msra.mxu0 0.0
        %193 = vmatprep.subr.mxu0 0.0
        %194 = vmatpush1.msra.mxu0 0.0
        %195 = vmatprep.subr.mxu0 0.0
        %196 = vmatpush1.msra.mxu0 0.0
        %197 = vmatprep.subr.mxu0 0.0
        %198 = vmatpush1.msra.mxu0 0.0
        %199 = vmatprep.subr.mxu0 0.0
        %200 = vmatpush1.msra.mxu0 0.0
        %201 = vmatprep.subr.mxu0 0.0
        %202 = vmatpush1.msra.mxu0 0.0
        %203 = vmatprep.subr.mxu0 0.0
        %204 = vmatpush1.msra.mxu0 0.0
        %205 = vmatprep.subr.mxu0 0.0
        %206 = vmatpush1.msra.mxu0 0.0
        %207 = vmatprep.subr.mxu0 0.0
        %208 = vmatpush1.msra.mxu0 0.0
        %209 = vmatprep.subr.mxu0 0.0
        %210 = vmatpush1.msra.mxu0 0.0
        %211 = vmatprep.subr.mxu0 0.0
        %212 = vmatpush1.msra.mxu0 0.0
        %213 = vmatprep.subr.mxu0 0.0
        %214 = vmatpush1.msra.mxu0 0.0
        %215 = vmatprep.subr.mxu0 0.0
        %216 = vmatpush1.msra.mxu0 0.0
        %217 = vmatprep.subr.mxu0 %v189
        %218 = vmatpush1.msra.mxu0 %v186
        %219 = vmatprep.subr.mxu0 %v177
        %220 = vmatpush1.msra.mxu0 %v176
        %221 = vmatprep.subr.mxu0 %v175
        %222 = vmatpush1.msra.mxu0 %v174
        %223 = vmatprep.subr.mxu0 0.0
        %224 = vmatpush2.msra.mxu0 0.0
        %225 = vmatprep.subr.mxu0 0.0
        %226 = vmatpush2.msra.mxu0 0.0
        %227 = vmatprep.subr.mxu0 0.0
        %228 = vmatpush2.msra.mxu0 0.0
        %229 = vmatprep.subr.mxu0 0.0
        %230 = vmatpush2.msra.mxu0 0.0
        %231 = vmatprep.subr.mxu0 0.0
        %232 = vmatpush2.msra.mxu0 0.0
        %233 = vmatprep.subr.mxu0 0.0
        %234 = vmatpush2.msra.mxu0 0.0
        %235 = vmatprep.subr.mxu0 0.0
        %236 = vmatpush2.msra.mxu0 0.0
        %237 = vmatprep.subr.mxu0 0.0
        %238 = vmatpush2.msra.mxu0 0.0
        %239 = vmatprep.subr.mxu0 0.0
        %240 = vmatpush2.msra.mxu0 0.0
        %241 = vmatprep.subr.mxu0 0.0
        %242 = vmatpush2.msra.mxu0 0.0
        %243 = vmatprep.subr.mxu0 0.0
        %244 = vmatpush2.msra.mxu0 0.0
        %245 = vmatprep.subr.mxu0 0.0
        %246 = vmatpush2.msra.mxu0 0.0
        %247 = vmatprep.subr.mxu0 0.0
        %248 = vmatpush2.msra.mxu0 0.0
        %249 = vmatprep.subr.mxu0 0.0
        %250 = vmatpush2.msra.mxu0 0.0
        %251 = vmatprep.subr.mxu0 0.0
        %252 = vmatpush2.msra.mxu0 0.0
        %253 = vmatprep.subr.mxu0 0.0
        %254 = vmatpush2.msra.mxu0 0.0
        %255 = vmatprep.mubr.f32.mxu0 0.0
        %256 = vmatmul.mubr.f32.gmra.mxu0 %v182
        %v257 = vpop.f32.mrf.mxu0
        %v258 = vadd.f32 0.0, %v257
        %v259 = vpop.f32.mrf.mxu0
        %v260 = vadd.f32 0.0, %v259
        %261 = vdwg.mxu0
        %262 = vst [vmem:[%s161] sm:$0xff] %v258
        %263 = vst [vmem:[%s161 + $0x8] sm:$0xff] %v260
        %s264 = sand.u32 %s87, 1
        %s265 = scalar_lea.sflag [#allocation3], %s264
        %s266 = sand.u32 %s87, 1
        %s267 = smul.addr %s266, 16
        %s268 = scalar_lea.vmem [#allocation2], %s267
        // Predicated region
        $region29: #{tpu_custom_call.1} parent=27 // pred_check
          %p269 = pneg %p97
        $region30: #{tpu_custom_call.1} parent=27 // pred_check_branch
          %271 = sbr.rel (%p269) target = $region32
        $region31: #{tpu_custom_call.1} parent=27 // pred_region
          %s272 = smul.u32 2, %s21
          %s274 = ssub.s32 256, 256
          %275 = vsyncadd %s265, %s274
          %s276 = smul.addr %s20, 2
          %s277 = sadd.s32 %s272, %s276
          %s278 = smul.addr %s277, 128
          %s279 = scalar_lea.hbm %s2, %s278
          %s281 = sshll.u32 %s268, 4
          %s282 = int_to_ptr.vmem [resolvable:$true] %s281
          %284 = dma.vmem_to_hbm [thread:$0]  %s282, 256, %s279, %s265
        $region32: #{tpu_custom_call.1} parent=27 // pred_fallthru
          _
      $region28: #{tpu_custom_call.1} parent=5 // pred_fallthru
        _
      %p285 = scmp.le.s32.totalorder 2, %s11
      // Predicated region
      $region33: #{tpu_custom_call.1} parent=5 // pred_check
        %p286 = pneg %p285
      $region34: #{tpu_custom_call.1} parent=5 // pred_check_branch
        %288 = sbr.rel (%p286) target = $region36
      $region35: #{tpu_custom_call.1} parent=5 // pred_region
        %s289 = ssub.s32 %s11, 2
        // Predicated region
        $region37: #{tpu_custom_call.1} parent=35 // pred_check
          %p290 = pneg %p103
        $region38: #{tpu_custom_call.1} parent=35 // pred_check_branch
          %292 = sbr.rel (%p290) target = $region40
        $region39: #{tpu_custom_call.1} parent=35 // pred_region
          %s293 = sand.u32 %s88, 1
          %s294 = scalar_lea.sflag [#allocation3], %s293
          %s295 = sand.u32 %s88, 1
          %s296 = smul.addr %s295, 16
          %s297 = scalar_lea.vmem [#allocation2], %s296
          %298 = dma.done %s294, 256
        $region40: #{tpu_custom_call.1} parent=35 // pred_fallthru
          _
      $region36: #{tpu_custom_call.1} parent=5 // pred_fallthru
        _
    $region6: #{tpu_custom_call.1} parent=1 // loop_footer
      %s15 = sadd.s32 1, %s11
    $region7: #{tpu_custom_call.1} parent=1 // loop_footer_branch
      %10 = sbr.rel target = $region3
    $region8: #{tpu_custom_call.1} parent=1 // loop_exit
      _
    %299 = vsyncpa [#allocation3], 1
    %s300 = scalar_lea.sflag [#allocation3], 1
    %301 = vsyncpa %s300, 1

</llo_original>
